<compile_context>
chip_gen: v6e
topology: v6e:2x2x1
jax: 0.10.0
libtpu: 0.0.40
codegen_flags: <defaults>
</compile_context>

<pallas_src>
import functools

import jax
import jax.numpy as jnp
from jax.experimental import pallas as pl
from jax.experimental.pallas import tpu as pltpu


def _round_up(x, m):
    return ((x + m - 1) // m) * m


def _cdiv(a, b):
    return -(-a // b)


def _vmem_capacity_bytes():
    """Best-effort per-core VMEM query; conservative (v7x) fallback."""
    try:
        info = pltpu.get_tpu_info()
        cap = getattr(info, "vmem_capacity_bytes", None)
        if cap:
            return int(cap)
    except Exception:
        pass
    return 64 * 1024 * 1024


def _classify_kernel(x_ref, w_ref, o_ref, *, hw_total, thw, masked):
    # x_ref: (TN, C1, THW)  activation slab (THW == HW in the common case)
    # w_ref: (C1, C2_pad)   f32 weight with 1/(H*W) pre-folded, resident
    # o_ref: (TN, C2_pad)   output block for this (hw_split, n_tile) grid point
    x = x_ref[...].astype(jnp.float32)
    if masked:
        # Ragged last HW chunk: zero lanes past the true H*W extent
        # (out-of-bounds block data is unspecified, so mask before summing).
        pos = pl.program_id(0) * thw + jax.lax.broadcasted_iota(
            jnp.int32, x.shape, dimension=2)
        x = jnp.where(pos < hw_total, x, 0.0)
    pooled = jnp.sum(x, axis=-1)                                 # (TN, C1) f32
    o_ref[...] = jnp.dot(pooled, w_ref[...],
                         preferred_element_type=jnp.float32).astype(o_ref.dtype)


def classify_forward(x, weight, *, tn=None, thw=None):
    """Classify head: global-avg-pool + 1x1 conv (no bias) + flatten.

    x: (N, C1, H, W); weight: (C2, C1, 1, 1) (PyTorch Conv2d layout).
    Returns (N, C2) in x.dtype.
    """
    N, C1, H, W = x.shape
    C2 = weight.shape[0]
    HW = H * W
    itemsize = jnp.dtype(x.dtype).itemsize
    C2_pad = _round_up(C2, 128)

    # ---- per-generation VMEM budgets --------------------------------------
    vmem_cap = _vmem_capacity_bytes()
    if vmem_cap >= 96 * 1024 * 1024:        # v5e / v6e: 128 MiB physical VMEM
        budget = 14 * 1024 * 1024
        vmem_limit = 48 * 1024 * 1024
    else:                                   # v7x: 64 MiB per TensorCore
        budget = 7 * 1024 * 1024
        vmem_limit = 34 * 1024 * 1024

    # ---- N tiling (output block rule: TN == N or TN % 8 == 0) -------------
    if tn is None:
        if N <= 8:
            tn = N
        elif N >= 32:
            tn = 32                          # feed the MXU >8 rows, fewer steps
        else:
            tn = 8
    assert tn == N or tn % 8 == 0, "tn must equal N or be a multiple of 8"
    n_blocks_n = _cdiv(N, tn)

    # ---- HW tiling: prefer one full-HW slab per N tile (no padding) -------
    full_tile_bytes = tn * C1 * HW * itemsize
    if thw is None:
        if full_tile_bytes <= budget:
            thw = HW                         # block last dim == full array dim
        else:
            thw = max(128, (budget // max(1, tn * C1 * itemsize)) // 128 * 128)
    if thw != HW:
        assert thw % 128 == 0, "HW tile must be a multiple of 128 lanes"
    n_splits = _cdiv(HW, thw)

    # v7x megacore: if there is only one grid point and the slab is big enough
    # that an extra step is free, split HW in two parallel halves so both
    # TensorCores get work.  Exact: partials are combined in f32 below.
    if (n_blocks_n == 1 and n_splits == 1 and HW >= 256
            and full_tile_bytes >= (1 << 20)):
        thw = _round_up(_cdiv(HW, 2), 128)
        n_splits = _cdiv(HW, thw)

    masked = (HW % thw) != 0

    # ---- wrapper-side prep (no copies of x) --------------------------------
    x_flat = x.reshape(N, C1, HW)            # metadata-only reshape, no HBM pad

    # (C2, C1, 1, 1) -> (C1, C2_pad); fold 1/(H*W); cast once.
    w_t = weight.reshape(C2, C1).astype(jnp.float32).T * (1.0 / HW)
    if C2_pad != C2:
        w_t = jnp.pad(w_t, ((0, 0), (0, C2_pad - C2)))

    out_dtype = jnp.float32 if n_splits > 1 else x.dtype
    grid = (n_splits, n_blocks_n)

    cost = pl.CostEstimate(
        flops=int(N * C1 * HW + 2 * N * C1 * C2_pad * n_splits),
        transcendentals=0,
        bytes_accessed=int(N * C1 * HW * itemsize
                           + C1 * C2_pad * 4
                           + n_splits * N * C2_pad * jnp.dtype(out_dtype).itemsize),
    )

    # Keep the scoped limit safely above the double-buffered working set.
    tile_bytes = tn * C1 * thw * itemsize
    need = 2 * tile_bytes + 2 * C1 * C2_pad * 4 + 2 * tn * C2_pad * 4 + (2 << 20)
    vmem_limit = int(max(vmem_limit, need))

    out_partials = pl.pallas_call(
        functools.partial(_classify_kernel, hw_total=HW, thw=thw, masked=masked),
        out_shape=jax.ShapeDtypeStruct((n_splits, N, C2_pad), out_dtype),
        grid_spec=pltpu.PrefetchScalarGridSpec(
            num_scalar_prefetch=0,
            grid=grid,
            in_specs=[
                # streamed activation slab: (tn, C1, thw)
                pl.BlockSpec((tn, C1, thw), lambda s, n: (n, 0, s)),
                # resident, pre-folded f32 weight
                pl.BlockSpec((C1, C2_pad), lambda s, n: (0, 0)),
            ],
            # one lane-dense output block per (hw_split, n_tile) grid point
            out_specs=pl.BlockSpec((None, tn, C2_pad), lambda s, n: (s, n, 0)),
        ),
        compiler_params=pltpu.CompilerParams(
            dimension_semantics=("parallel", "parallel"),
            vmem_limit_bytes=vmem_limit,
        ),
        cost_estimate=cost,
    )(x_flat, w_t)

    res = out_partials.sum(axis=0) if n_splits > 1 else out_partials[0]
    return res[:, :C2].astype(x.dtype)


def _reference(x, weight):
    # Pure-JAX reference mirroring the PyTorch module.
    pooled = jnp.mean(x, axis=(2, 3))                            # (N, C1)
    w = weight.reshape(weight.shape[0], weight.shape[1])         # (C2, C1)
    return pooled @ w.T                                          # (N, C2)


if __name__ == "__main__":
    key = jax.random.PRNGKey(0)
    kx, kw, kx2, kw2 = jax.random.split(key, 4)

    # Primary small test: single-slab (full-HW block) fast path.
    N, C1, H, W = 2, 4, 16, 16
    C2 = 8
    x = jax.random.normal(kx, (N, C1, H, W), dtype=jnp.float32)
    weight = jax.random.normal(kw, (C2, C1, 1, 1), dtype=jnp.float32) * 0.1

    out = jax.block_until_ready(classify_forward(x, weight))
    ref = _reference(x, weight)
    assert out.shape == (N, C2)
    assert jnp.allclose(out, ref, atol=1e-5, rtol=1e-5), "mismatch vs reference"

    # Secondary test: exercises the parallel HW-split + ragged-tail masking
    # path (HW = 400 not a multiple of the 256-lane chunk).
    N2, C12, H2, W2, C22 = 2, 512, 20, 20, 10
    x2 = jax.random.normal(kx2, (N2, C12, H2, W2), dtype=jnp.float32)
    w2 = jax.random.normal(kw2, (C22, C12, 1, 1), dtype=jnp.float32) * 0.05

    out2 = jax.block_until_ready(classify_forward(x2, w2))
    ref2 = _reference(x2, w2)
    assert out2.shape == (N2, C22)
    assert jnp.allclose(out2, ref2, atol=1e-4, rtol=1e-4), "mismatch (split path)"

    print("KERNEL_OK")
</pallas_src>

<mosaic_0001>
module attributes {stable_mosaic.version = 11 : i64} {
  func.func @_classify_kernel(%arg0: i32, %arg1: i32, %arg2: memref<2x4x256xf32, #tpu.memory_space<vmem>>, %arg3: memref<4x128xf32, #tpu.memory_space<vmem>>, %arg4: memref<1x2x128xf32, #tpu.memory_space<vmem>>) attributes {dimension_semantics = [#tpu.dimension_semantics<parallel>, #tpu.dimension_semantics<parallel>], iteration_bounds = array<i64: 1, 1>, scalar_prefetch = 0 : i64, scratch_operands = 0 : i64, tpu.core_type = #tpu.core_type<tc>, window_params = [{transform_indices = @transform_0, window_bounds = array<i64: 2, 4, 256>}, {pipeline_mode = #tpu.pipeline_mode<synchronous>, transform_indices = @transform_1, window_bounds = array<i64: 4, 128>}, {transform_indices = @transform_2, window_bounds = array<i64: 1, 2, 128>}]} {
    %c0 = arith.constant 0 : index
    %c0_0 = arith.constant 0 : index
    %c0_1 = arith.constant 0 : index
    %0 = vector.load %arg2[%c0, %c0_0, %c0_1] : memref<2x4x256xf32, #tpu.memory_space<vmem>>, vector<2x4x256xf32>
    %cst = arith.constant dense<0.000000e+00> : vector<2x4xf32>
    %1 = vector.multi_reduction <add>, %0, %cst [2] : vector<2x4x256xf32> to vector<2x4xf32>
    %c0_2 = arith.constant 0 : index
    %c0_3 = arith.constant 0 : index
    %2 = vector.load %arg3[%c0_2, %c0_3] : memref<4x128xf32, #tpu.memory_space<vmem>>, vector<4x128xf32>
    %cst_4 = arith.constant dense<0.000000e+00> : vector<2x128xf32>
    %3 = tpu.matmul %1, %2, %cst_4 {dimension_numbers = #tpu.dot_dimension_numbers<[1], [0], [0], [1], [0, 0, 1, 1], [], []>} : vector<2x4xf32>, vector<4x128xf32>, vector<2x128xf32> -> vector<2x128xf32>
    %c0_5 = arith.constant 0 : index
    %c0_6 = arith.constant 0 : index
    %c0_7 = arith.constant 0 : index
    %4 = vector.load %arg4[%c0_5, %c0_6, %c0_7] : memref<1x2x128xf32, #tpu.memory_space<vmem>>, vector<1x2x128xf32>
    %5 = vector.shape_cast %4 : vector<1x2x128xf32> to vector<2x128xf32>
    %6 = vector.shape_cast %3 : vector<2x128xf32> to vector<1x2x128xf32>
    tpu.vector_store %arg4[%c0_5, %c0_6, %c0_7], %6 {strides = array<i32>} : memref<1x2x128xf32, #tpu.memory_space<vmem>>, vector<1x2x128xf32>,
    return
  }
  func.func @transform_0(%arg0: i32, %arg1: i32) -> (i32, i32, i32) {
    %c0_i32 = arith.constant 0 : i32
    %c0_i32_0 = arith.constant 0 : i32
    return %arg1, %c0_i32, %arg0 : i32, i32, i32
  }
  func.func @transform_1(%arg0: i32, %arg1: i32) -> (i32, i32) {
    %c0_i32 = arith.constant 0 : i32
    %c0_i32_0 = arith.constant 0 : i32
    %c0_i32_1 = arith.constant 0 : i32
    return %c0_i32, %c0_i32_0 : i32, i32
  }
  func.func @transform_2(%arg0: i32, %arg1: i32) -> (i32, i32, i32) {
    %c0_i32 = arith.constant 0 : i32
    %c0_i32_0 = arith.constant 0 : i32
    return %arg0, %arg1, %c0_i32 : i32, i32, i32
  }
}

</mosaic_0001>

<llo_original>
// kernel: tpu_custom_call.1
$region0: #{tpu_custom_call.1}
  #allocation0 [shape = 'u32[]', space=smem, size = 0x4, offset = 0x4, fixed_abs, tag = 'smem constant byte address 0x4 - core index']
  #allocation1 [shape = 'u32[144,128]{1,0:T(1,128)}', space=vmem, size = 0x12000, scoped, tag = 'internal scratch']
  %s0 = inlined_call_operand.hbm [shape: f32[2,4,256], index: 0, kind: input, shape index: {}]
  %s1 = inlined_call_operand.hbm [shape: f32[4,128], index: 1, kind: input, shape index: {}]
  %s2 = inlined_call_operand.hbm [shape: f32[1,2,128], index: 2, kind: output, shape index: {}]
  %s3 = sld [smem:[#allocation0]]
  $region26: #{tpu_custom_call.1} parent=0
    _
  %s5 = ssub.s32 1, %s3
  %s6 = scalar_select 0, %s5, %s3
  $region1: #{tpu_custom_call.1} parent=0
    #allocation2 [shape = 'u8[8192]{0}', space=vmem, size = 0x2000, scoped, tag = 'input window, operand 0, single buffered']
    #allocation3 [shape = 's32[1]{0}', space=sflag, size = 0x4, scoped, tag = 'scoped memory for tpu_custom_call.1']
    #allocation4 [shape = 's32[1]{0}', space=sflag, size = 0x4, scoped, tag = 'scoped memory for tpu_custom_call.1']
    #allocation5 [shape = 'u8[2048]{0}', space=vmem, size = 0x800, scoped, tag = 'input window, operand 1, single buffered']
    #allocation6 [shape = 's32[1]{0}', space=sflag, size = 0x4, scoped, tag = 'scoped memory for tpu_custom_call.1']
    #allocation7 [shape = 'u8[1024]{0}', space=vmem, size = 0x400, scoped, tag = 'output window, operand 0, single buffered']
    %7 = vsyncpa [#allocation3], 0
    %8 = vsyncpa [#allocation6], 0
    %9 = vsyncpa [#allocation4], 0
    // Predicated region
    $region2: #{tpu_custom_call.1} parent=1 // pred_check
      _
    $region3: #{tpu_custom_call.1} parent=1 // pred_check_branch
      %11 = sbr.rel (0) target = $region5
    $region4: #{tpu_custom_call.1} parent=1 // pred_region
      %s13 = ssub.s32 256, 256
      %14 = vsyncadd [#allocation3], %s13
      %s15 = sshll.u32 [#allocation2], 4
      %s16 = int_to_ptr.vmem [resolvable:$true] %s15
      %21 = dma.hbm_to_vmem [thread:$0]  %s0, 256, %s16, [#allocation3], 128, 128, 8
    $region5: #{tpu_custom_call.1} parent=1 // pred_fallthru
      _
    // Predicated region
    $region6: #{tpu_custom_call.1} parent=1 // pred_check
      _
    $region7: #{tpu_custom_call.1} parent=1 // pred_check_branch
      %23 = sbr.rel (0) target = $region9
    $region8: #{tpu_custom_call.1} parent=1 // pred_region
      %s25 = ssub.s32 64, 64
      %26 = vsyncadd [#allocation6], %s25
      %s28 = sshll.u32 [#allocation5], 4
      %s29 = int_to_ptr.vmem [resolvable:$true] %s28
      %31 = dma.hbm_to_vmem [thread:$0]  %s1, 64, %s29, [#allocation6]
    $region9: #{tpu_custom_call.1} parent=1 // pred_fallthru
      _
    // Predicated region
    $region10: #{tpu_custom_call.1} parent=1 // pred_check
      _
    $region11: #{tpu_custom_call.1} parent=1 // pred_check_branch
      %33 = sbr.rel (0) target = $region13
    $region12: #{tpu_custom_call.1} parent=1 // pred_region
      %34 = dma.done [#allocation3], 256
    $region13: #{tpu_custom_call.1} parent=1 // pred_fallthru
      _
    // Predicated region
    $region14: #{tpu_custom_call.1} parent=1 // pred_check
      _
    $region15: #{tpu_custom_call.1} parent=1 // pred_check_branch
      %36 = sbr.rel (0) target = $region17
    $region16: #{tpu_custom_call.1} parent=1 // pred_region
      %37 = dma.done [#allocation6], 64
    $region17: #{tpu_custom_call.1} parent=1 // pred_fallthru
      _
    %v38 = vld [vmem:[#allocation2] sm:$0xff]
    %v39 = vld [vmem:[#allocation2 + $0x8] sm:$0xff]
    %v42 = vcombine.high %v38, %v38
    %v43 = vcombine.high %v39, %v39
    %vm46 = vcmask 1043456
    %v47 = vsel %vm46, %v38, 0.0
    %v48 = vsel %vm46, %v42, 0.0
    %v49 = vadd.f32 %v47, %v48
    %50 = vadd.xlane.f32.xlu0 %v49
    %v51 = vpop.xlane.xlu0 %50
    %v52 = vsel %vm46, %v39, 0.0
    %v53 = vsel %vm46, %v43, 0.0
    %v54 = vadd.f32 %v52, %v53
    %55 = vadd.xlane.f32.xlu0 %v54
    %v56 = vpop.xlane.xlu0 %55
    %v57 = vld [vmem:[#allocation5] sm:$0xf]
    %v60 = vlaneseq
    %v61 = vand.u32 %v60, 127
    %v62 = vlaneseq
    %v63 = vshrl.u32 %v62, 7
    %v64 = vsub.s32 %v61, %v63
    %v65 = vrot.slane %v51, %v64
    %v66 = vlaneseq
    %v67 = vshrl.u32 %v66, 7
    %v68 = vsub.s32 %v61, %v67
    %v69 = vrot.slane %v56, %v68
    %vm70 = vcmask 1041409
    %v71 = vsel %vm70, %v69, %v65
    %vm72 = vcmask 31744
    %v73 = vsel %vm72, %v71, 0
    %v76 = vsel %vm46, %v57, 0
    %78 = vmatprep.subr.mxu0 0.0
    %79 = vmatpush1.msra.mxu0 0.0
    %80 = vmatprep.subr.mxu0 0.0
    %81 = vmatpush1.msra.mxu0 0.0
    %82 = vmatprep.subr.mxu0 0.0
    %83 = vmatpush1.msra.mxu0 0.0
    %84 = vmatprep.subr.mxu0 0.0
    %85 = vmatpush1.msra.mxu0 0.0
    %86 = vmatprep.subr.mxu0 0.0
    %87 = vmatpush1.msra.mxu0 0.0
    %88 = vmatprep.subr.mxu0 0.0
    %89 = vmatpush1.msra.mxu0 0.0
    %90 = vmatprep.subr.mxu0 0.0
    %91 = vmatpush1.msra.mxu0 0.0
    %92 = vmatprep.subr.mxu0 0.0
    %93 = vmatpush1.msra.mxu0 0.0
    %94 = vmatprep.subr.mxu0 0.0
    %95 = vmatpush1.msra.mxu0 0.0
    %96 = vmatprep.subr.mxu0 0.0
    %97 = vmatpush1.msra.mxu0 0.0
    %98 = vmatprep.subr.mxu0 0.0
    %99 = vmatpush1.msra.mxu0 0.0
    %100 = vmatprep.subr.mxu0 0.0
    %101 = vmatpush1.msra.mxu0 0.0
    %102 = vmatprep.subr.mxu0 0.0
    %103 = vmatpush1.msra.mxu0 0.0
    %104 = vmatprep.subr.mxu0 0.0
    %105 = vmatpush1.msra.mxu0 0.0
    %106 = vmatprep.subr.mxu0 0.0
    %107 = vmatpush1.msra.mxu0 0.0
    %108 = vmatprep.subr.mxu0 0.0
    %109 = vmatpush1.msra.mxu0 %v76
    %110 = vmatprep.subr.mxu0 0.0
    %111 = vmatpush2.msra.mxu0 0.0
    %112 = vmatprep.subr.mxu0 0.0
    %113 = vmatpush2.msra.mxu0 0.0
    %114 = vmatprep.subr.mxu0 0.0
    %115 = vmatpush2.msra.mxu0 0.0
    %116 = vmatprep.subr.mxu0 0.0
    %117 = vmatpush2.msra.mxu0 0.0
    %118 = vmatprep.subr.mxu0 0.0
    %119 = vmatpush2.msra.mxu0 0.0
    %120 = vmatprep.subr.mxu0 0.0
    %121 = vmatpush2.msra.mxu0 0.0
    %122 = vmatprep.subr.mxu0 0.0
    %123 = vmatpush2.msra.mxu0 0.0
    %124 = vmatprep.subr.mxu0 0.0
    %125 = vmatpush2.msra.mxu0 0.0
    %126 = vmatprep.subr.mxu0 0.0
    %127 = vmatpush2.msra.mxu0 0.0
    %128 = vmatprep.subr.mxu0 0.0
    %129 = vmatpush2.msra.mxu0 0.0
    %130 = vmatprep.subr.mxu0 0.0
    %131 = vmatpush2.msra.mxu0 0.0
    %132 = vmatprep.subr.mxu0 0.0
    %133 = vmatpush2.msra.mxu0 0.0
    %134 = vmatprep.subr.mxu0 0.0
    %135 = vmatpush2.msra.mxu0 0.0
    %136 = vmatprep.subr.mxu0 0.0
    %137 = vmatpush2.msra.mxu0 0.0
    %138 = vmatprep.subr.mxu0 0.0
    %139 = vmatpush2.msra.mxu0 0.0
    %140 = vmatprep.subr.mxu0 0.0
    %141 = vmatpush2.msra.mxu0 0.0
    %142 = vmatprep.mubr.f32.mxu0 0.0
    %143 = vmatmul.mubr.f32.gmra.mxu0 %v73
    %v144 = vpop.f32.mrf.mxu0
    %v145 = vadd.f32 0.0, %v144
    %v146 = vpop.f32.mrf.mxu0
    %147 = vdwg.mxu0
    %148 = vst [vmem:[#allocation7] sm:$0x3] %v145
    // Predicated region
    $region18: #{tpu_custom_call.1} parent=1 // pred_check
      _
    $region19: #{tpu_custom_call.1} parent=1 // pred_check_branch
      %150 = sbr.rel (0) target = $region21
    $region20: #{tpu_custom_call.1} parent=1 // pred_region
      %s152 = ssub.s32 32, 32
      %153 = vsyncadd [#allocation4], %s152
      %s155 = sshll.u32 [#allocation7], 4
      %s156 = int_to_ptr.vmem [resolvable:$true] %s155
      %158 = dma.vmem_to_hbm [thread:$0]  %s156, 32, %s2, [#allocation4]
    $region21: #{tpu_custom_call.1} parent=1 // pred_fallthru
      _
    // Predicated region
    $region22: #{tpu_custom_call.1} parent=1 // pred_check
      _
    $region23: #{tpu_custom_call.1} parent=1 // pred_check_branch
      %160 = sbr.rel (0) target = $region25
    $region24: #{tpu_custom_call.1} parent=1 // pred_region
      %161 = dma.done [#allocation4], 32
    $region25: #{tpu_custom_call.1} parent=1 // pred_fallthru
      _
    %162 = vsyncpa [#allocation3], 1
    %163 = vsyncpa [#allocation6], 1
    %164 = vsyncpa [#allocation4], 1

</llo_original>
